<compile_context>
chip_gen: v7x
topology: tpu7x:2x2x1
jax: 0.10.0
libtpu: 0.0.40
codegen_flags: <defaults>
</compile_context>

<pallas_src>
import functools

import jax
import jax.numpy as jnp
from jax.experimental import pallas as pl
from jax.experimental.pallas import tpu as pltpu


def _round_up(x, m):
    return ((x + m - 1) // m) * m


def _t5_ff_kernel(x_ref, wi_ref, wo_ref, o_ref, y_ref, acc_ref, *, eps):
    """One (tm, D) row tile x one tf-wide slice of d_ff.

    Grid = (M_pad // tm, F // tf); axis 1 is the reduction axis of the second
    matmul (marked "arbitrary"), axis 0 is parallel over row tiles.

      x_ref  : (tm, D)   input rows                 index_map (i, f) -> (i, 0)
      wi_ref : (D, tf)   bf16, ln_w pre-folded      index_map (i, f) -> (0, f)
      wo_ref : (tf, D)   bf16, w_l pre-folded       index_map (i, f) -> (f, 0)
      o_ref  : (tm, D)   output rows                index_map (i, f) -> (i, 0)
      y_ref  : (tm, D)   bf16 scratch: RMS-normed rows (computed once per i)
      acc_ref: (tm, D)   f32 scratch accumulator for the wo matmul
    """
    f = pl.program_id(1)

    @pl.when(f == 0)
    def _():
        x = x_ref[...].astype(jnp.float32)
        var = jnp.mean(x * x, axis=-1, keepdims=True)
        # ln_w is folded into wi, so only the rsqrt scaling happens here.
        y_ref[...] = (x * jax.lax.rsqrt(var + eps)).astype(jnp.bfloat16)
        acc_ref[...] = jnp.zeros_like(acc_ref)

    # relu(y @ wi_f) -> (tm, tf); MXU in bf16, f32 accumulation.
    h = jnp.dot(y_ref[...], wi_ref[...], preferred_element_type=jnp.float32)
    h = jnp.maximum(h, 0.0).astype(jnp.bfloat16)
    # Partial contribution of this d_ff slice through wo (w_l pre-folded).
    acc_ref[...] += jnp.dot(h, wo_ref[...], preferred_element_type=jnp.float32)

    @pl.when(f == pl.num_programs(1) - 1)
    def _():
        o_ref[...] = (x_ref[...].astype(jnp.float32)
                      + acc_ref[...]).astype(o_ref.dtype)


def t5_layer_ff(x, ln_w, wi, w_l, wo, *, eps=1e-6, tm=256, tf=512):
    """x: (batch, seq, d_model). wi: (d_model, d_ff), wo: (d_ff, d_model)
    (i.e. PyTorch nn.Linear weights pre-transposed for right-multiplication).
    Returns (batch, seq, d_model) in x.dtype."""
    B, S, D = x.shape
    F = wi.shape[1]
    assert wi.shape == (D, F) and wo.shape == (F, D)
    assert D % 128 == 0, "d_model must be a multiple of 128 (lane-dense)"
    assert F % 128 == 0, "d_ff must be a multiple of 128 (lane-dense)"

    M = B * S
    tm = min(tm, _round_up(M, 8))          # don't over-tile tiny inputs
    tf = min(tf, F)
    assert F % tf == 0, "d_ff must be a multiple of tf"

    M_pad = _round_up(M, tm)
    x2 = x.reshape(M, D)
    if M_pad != M:
        # Zero rows are safe through RMSNorm (rsqrt(eps) * 0 = 0).
        x2 = jnp.pad(x2, ((0, M_pad - M), (0, 0)))

    # Fold the layer-norm weight into wi and the adapter scale w_l into wo,
    # then cast weights to bf16 for the MXU.
    wi_s = (ln_w.astype(jnp.float32)[:, None]
            * wi.astype(jnp.float32)).astype(jnp.bfloat16)
    wo_s = (w_l.astype(jnp.float32)[:, None]
            * wo.astype(jnp.float32)).astype(jnp.bfloat16)

    kernel = functools.partial(_t5_ff_kernel, eps=eps)

    cost = pl.CostEstimate(
        flops=2 * 2 * M * D * F,           # two matmuls
        transcendentals=M,                  # one rsqrt per row
        bytes_accessed=(x2.size * x2.dtype.itemsize
                        + wi_s.size * 2 + wo_s.size * 2
                        + M_pad * D * x.dtype.itemsize),
    )

    out = pl.pallas_call(
        kernel,
        out_shape=jax.ShapeDtypeStruct((M_pad, D), x.dtype),
        grid_spec=pltpu.PrefetchScalarGridSpec(
            num_scalar_prefetch=0,
            grid=(M_pad // tm, F // tf),
            in_specs=[
                pl.BlockSpec((tm, D), lambda i, f: (i, 0)),   # x row tile
                pl.BlockSpec((D, tf), lambda i, f: (0, f)),   # wi slice
                pl.BlockSpec((tf, D), lambda i, f: (f, 0)),   # wo slice
            ],
            out_specs=pl.BlockSpec((tm, D), lambda i, f: (i, 0)),
            scratch_shapes=[
                pltpu.VMEM((tm, D), jnp.bfloat16),   # RMS-normed rows
                pltpu.VMEM((tm, D), jnp.float32),    # f32 accumulator
            ],
        ),
        compiler_params=pltpu.CompilerParams(
            dimension_semantics=("parallel", "arbitrary")),
        cost_estimate=cost,
    )(x2, wi_s, wo_s)

    return out[:M].reshape(B, S, D)


def _reference_f32(x, ln_w, wi, w_l, wo, eps=1e-6):
    var = jnp.mean(x * x, axis=-1, keepdims=True)
    y = x * jax.lax.rsqrt(var + eps) * ln_w
    h = jnp.maximum(y @ wi, 0.0) * w_l
    return x + h @ wo


if __name__ == "__main__":
    # Small but lane-dense T5-like config: d_model=128, d_ff=256, batch=2, seq=8.
    B, S, D, F = 2, 8, 128, 256
    eps = 1e-6

    key = jax.random.PRNGKey(0)
    kx, kwi, kwo, kln = jax.random.split(key, 4)

    x = jax.random.normal(kx, (B, S, D), dtype=jnp.float32)
    # PyTorch nn.Linear weight is (out, in); store transposed for x @ W.
    wi = jax.random.normal(kwi, (D, F), dtype=jnp.float32) * 0.05
    wo = jax.random.normal(kwo, (F, D), dtype=jnp.float32) * 0.05
    ln_w = jnp.ones((D,), dtype=jnp.float32) + 0.01 * jax.random.normal(kln, (D,))
    w_l = jnp.ones((F,), dtype=jnp.float32)   # nn.Parameter(torch.ones(d_ff))

    # tf=128 so the d_ff reduction axis takes 2 steps (exercises the accumulator).
    out = t5_layer_ff(x, ln_w, wi, w_l, wo, eps=eps, tf=128)
    out = jax.block_until_ready(out)

    ref = _reference_f32(x, ln_w, wi, w_l, wo, eps=eps)
    assert out.shape == (B, S, D)
    # bf16 matmul operands (f32 accumulation) -> loosened tolerance vs f32 ref.
    assert jnp.allclose(out, ref, atol=3e-2, rtol=3e-2), "mismatch vs reference"

    print("KERNEL_OK")
</pallas_src>

<mosaic_0001>
module attributes {stable_mosaic.version = 11 : i64} {
  func.func @_t5_ff_kernel(%arg0: i32, %arg1: i32, %arg2: memref<16x128xf32, #tpu.memory_space<vmem>>, %arg3: memref<128x128xbf16, #tpu.memory_space<vmem>>, %arg4: memref<128x128xbf16, #tpu.memory_space<vmem>>, %arg5: memref<16x128xf32, #tpu.memory_space<vmem>>, %arg6: memref<16x128xbf16, #tpu.memory_space<vmem>>, %arg7: memref<16x128xf32, #tpu.memory_space<vmem>>) attributes {dimension_semantics = [#tpu.dimension_semantics<parallel>, #tpu.dimension_semantics<arbitrary>], iteration_bounds = array<i64: 1, 2>, scalar_prefetch = 0 : i64, scratch_operands = 2 : i64, tpu.core_type = #tpu.core_type<tc>, window_params = [{transform_indices = @transform_0, window_bounds = array<i64: 16, 128>}, {transform_indices = @transform_1, window_bounds = array<i64: 128, 128>}, {transform_indices = @transform_2, window_bounds = array<i64: 128, 128>}, {transform_indices = @transform_3, window_bounds = array<i64: 16, 128>}]} {
    %c0_i32 = arith.constant 0 : i32
    %0 = arith.cmpi eq, %arg1, %c0_i32 : i32
    %1 = arith.extui %0 : i1 to i32
    %c0_i32_0 = arith.constant 0 : i32
    %2 = arith.cmpi ne, %1, %c0_i32_0 : i32
    scf.if %2 {
      %c0_13 = arith.constant 0 : index
      %c0_14 = arith.constant 0 : index
      %17 = vector.load %arg2[%c0_13, %c0_14] : memref<16x128xf32, #tpu.memory_space<vmem>>, vector<16x128xf32>
      %18 = arith.mulf %17, %17 : vector<16x128xf32>
      %cst_15 = arith.constant dense<0.000000e+00> : vector<16xf32>
      %19 = vector.multi_reduction <add>, %18, %cst_15 [1] : vector<16x128xf32> to vector<16xf32>
      %20 = vector.shape_cast %19 : vector<16xf32> to vector<16x1xf32>
      %cst_16 = arith.constant 1.280000e+02 : f32
      %21 = vector.broadcast %cst_16 : f32 to vector<16x1xf32>
      %22 = arith.divf %20, %21 : vector<16x1xf32>
      %cst_17 = arith.constant 9.99999997E-7 : f32
      %23 = vector.broadcast %cst_17 : f32 to vector<16x1xf32>
      %24 = arith.addf %22, %23 : vector<16x1xf32>
      %25 = math.rsqrt %24 : vector<16x1xf32>
      %26 = vector.broadcast %25 : vector<16x1xf32> to vector<16x128xf32>
      %27 = arith.mulf %17, %26 : vector<16x128xf32>
      %28 = arith.truncf %27 : vector<16x128xf32> to vector<16x128xbf16>
      %c0_18 = arith.constant 0 : index
      %c0_19 = arith.constant 0 : index
      %29 = vector.load %arg6[%c0_18, %c0_19] : memref<16x128xbf16, #tpu.memory_space<vmem>>, vector<16x128xbf16>
      tpu.vector_store %arg6[%c0_18, %c0_19], %28 {strides = array<i32>} : memref<16x128xbf16, #tpu.memory_space<vmem>>, vector<16x128xbf16>,
      %cst_20 = arith.constant 0.000000e+00 : f32
      %30 = vector.broadcast %cst_20 : f32 to vector<16x128xf32>
      %c0_21 = arith.constant 0 : index
      %c0_22 = arith.constant 0 : index
      %31 = vector.load %arg7[%c0_21, %c0_22] : memref<16x128xf32, #tpu.memory_space<vmem>>, vector<16x128xf32>
      tpu.vector_store %arg7[%c0_21, %c0_22], %30 {strides = array<i32>} : memref<16x128xf32, #tpu.memory_space<vmem>>, vector<16x128xf32>,
    } else {
    }
    %c0 = arith.constant 0 : index
    %c0_1 = arith.constant 0 : index
    %3 = vector.load %arg6[%c0, %c0_1] : memref<16x128xbf16, #tpu.memory_space<vmem>>, vector<16x128xbf16>
    %c0_2 = arith.constant 0 : index
    %c0_3 = arith.constant 0 : index
    %4 = vector.load %arg3[%c0_2, %c0_3] : memref<128x128xbf16, #tpu.memory_space<vmem>>, vector<128x128xbf16>
    %cst = arith.constant dense<0.000000e+00> : vector<16x128xf32>
    %5 = tpu.matmul %3, %4, %cst {dimension_numbers = #tpu.dot_dimension_numbers<[1], [0], [0], [1], [0, 0, 1, 1], [], []>} : vector<16x128xbf16>, vector<128x128xbf16>, vector<16x128xf32> -> vector<16x128xf32>
    %cst_4 = arith.constant 0.000000e+00 : f32
    %6 = vector.broadcast %cst_4 : f32 to vector<16x128xf32>
    %7 = arith.maximumf %5, %6 : vector<16x128xf32>
    %8 = arith.truncf %7 : vector<16x128xf32> to vector<16x128xbf16>
    %c0_5 = arith.constant 0 : index
    %c0_6 = arith.constant 0 : index
    %9 = vector.load %arg7[%c0_5, %c0_6] : memref<16x128xf32, #tpu.memory_space<vmem>>, vector<16x128xf32>
    %c0_7 = arith.constant 0 : index
    %c0_8 = arith.constant 0 : index
    %10 = vector.load %arg4[%c0_7, %c0_8] : memref<128x128xbf16, #tpu.memory_space<vmem>>, vector<128x128xbf16>
    %cst_9 = arith.constant dense<0.000000e+00> : vector<16x128xf32>
    %11 = tpu.matmul %8, %10, %cst_9 {dimension_numbers = #tpu.dot_dimension_numbers<[1], [0], [0], [1], [0, 0, 1, 1], [], []>} : vector<16x128xbf16>, vector<128x128xbf16>, vector<16x128xf32> -> vector<16x128xf32>
    %12 = arith.addf %9, %11 : vector<16x128xf32>
    %c0_10 = arith.constant 0 : index
    %c0_11 = arith.constant 0 : index
    %13 = vector.load %arg7[%c0_10, %c0_11] : memref<16x128xf32, #tpu.memory_space<vmem>>, vector<16x128xf32>
    tpu.vector_store %arg7[%c0_10, %c0_11], %12 {strides = array<i32>} : memref<16x128xf32, #tpu.memory_space<vmem>>, vector<16x128xf32>,
    %c1_i32 = arith.constant 1 : i32
    %14 = arith.cmpi eq, %arg1, %c1_i32 : i32
    %15 = arith.extui %14 : i1 to i32
    %c0_i32_12 = arith.constant 0 : i32
    %16 = arith.cmpi ne, %15, %c0_i32_12 : i32
    scf.if %16 {
      %c0_13 = arith.constant 0 : index
      %c0_14 = arith.constant 0 : index
      %17 = vector.load %arg2[%c0_13, %c0_14] : memref<16x128xf32, #tpu.memory_space<vmem>>, vector<16x128xf32>
      %c0_15 = arith.constant 0 : index
      %c0_16 = arith.constant 0 : index
      %18 = vector.load %arg7[%c0_15, %c0_16] : memref<16x128xf32, #tpu.memory_space<vmem>>, vector<16x128xf32>
      %19 = arith.addf %17, %18 : vector<16x128xf32>
      %c0_17 = arith.constant 0 : index
      %c0_18 = arith.constant 0 : index
      %20 = vector.load %arg5[%c0_17, %c0_18] : memref<16x128xf32, #tpu.memory_space<vmem>>, vector<16x128xf32>
      tpu.vector_store %arg5[%c0_17, %c0_18], %19 {strides = array<i32>} : memref<16x128xf32, #tpu.memory_space<vmem>>, vector<16x128xf32>,
    } else {
    }
    return
  }
  func.func @transform_0(%arg0: i32, %arg1: i32) -> (i32, i32) {
    %c0_i32 = arith.constant 0 : i32
    %c0_i32_0 = arith.constant 0 : i32
    return %arg0, %c0_i32 : i32, i32
  }
  func.func @transform_1(%arg0: i32, %arg1: i32) -> (i32, i32) {
    %c0_i32 = arith.constant 0 : i32
    %c0_i32_0 = arith.constant 0 : i32
    return %c0_i32, %arg1 : i32, i32
  }
  func.func @transform_2(%arg0: i32, %arg1: i32) -> (i32, i32) {
    %c0_i32 = arith.constant 0 : i32
    %c0_i32_0 = arith.constant 0 : i32
    return %arg1, %c0_i32 : i32, i32
  }
  func.func @transform_3(%arg0: i32, %arg1: i32) -> (i32, i32) {
    %c0_i32 = arith.constant 0 : i32
    %c0_i32_0 = arith.constant 0 : i32
    return %arg0, %c0_i32 : i32, i32
  }
}

</mosaic_0001>

<llo_original>
// kernel: tpu_custom_call.1
$region0: #{tpu_custom_call.1}
  #allocation0 [shape = 'u32[]', space=smem, size = 0x4, offset = 0x4, fixed_abs, tag = 'smem constant byte address 0x4 - core index']
  #allocation1 [shape = 'u32[144,128]{1,0:T(1,128)}', space=vmem, size = 0x12000, scoped, tag = 'internal scratch']
  #allocation2 [shape = 'bf16[16,128]{1,0:T(16,128)(2,1)}', space=vmem, size = 0x1000, scoped, tag = 'scratch operand']
  #allocation3 [shape = 'f32[16,128]{1,0:T(8,128)}', space=vmem, size = 0x2000, scoped, tag = 'scratch operand']
  %s0 = inlined_call_operand.hbm [shape: f32[16,128], index: 0, kind: input, shape index: {}]
  %s1 = inlined_call_operand.hbm [shape: bf16[128,256], index: 1, kind: input, shape index: {}]
  %s2 = inlined_call_operand.hbm [shape: bf16[256,128], index: 2, kind: input, shape index: {}]
  %s3 = inlined_call_operand.hbm [shape: f32[16,128], index: 3, kind: output, shape index: {}]
  %s4 = sld [smem:[#allocation0]]
  $region65: #{tpu_custom_call.1} parent=0
    _
  %s6 = ssub.s32 1, %s4
  %s7 = scalar_select 0, %s6, %s4
  $region1: #{tpu_custom_call.1} parent=0
    #allocation4 [shape = 'u8[8192]{0}', space=vmem, size = 0x2000, scoped, tag = 'input window, operand 0, single buffered']
    #allocation5 [shape = 's32[2]{0}', space=sflag, size = 0x8, scoped, tag = 'scoped memory for tpu_custom_call.1']
    #allocation6 [shape = 's32[2]{0}', space=sflag, size = 0x8, scoped, tag = 'scoped memory for tpu_custom_call.1']
    #allocation7 [shape = 'u8[65536]{0}', space=vmem, size = 0x10000, scoped, tag = 'input window, operand 1']
    #allocation8 [shape = 's32[2]{0}', space=sflag, size = 0x8, scoped, tag = 'scoped memory for tpu_custom_call.1']
    #allocation9 [shape = 'u8[65536]{0}', space=vmem, size = 0x10000, scoped, tag = 'input window, operand 2']
    #allocation10 [shape = 'u8[8192]{0}', space=vmem, size = 0x2000, scoped, tag = 'output window, operand 0, single buffered']
    %8 = vsyncpa [#allocation5], 0
    %9 = vsyncpa [#allocation8], 0
    %s10 = scalar_lea.sflag [#allocation8], 1
    %11 = vsyncpa %s10, 0
    %12 = vsyncpa [#allocation6], 0
    loop: start=0, step=1, limit=4
    $region2: #{tpu_custom_call.1} parent=1 // loop_pre_header
      _
    $region3: #{tpu_custom_call.1} parent=1 // loop_header
      %s14 = sphi 0, %s18
      %p15 = scmp.ge.s32.totalorder %s14, 4
      %s21 = sphi 0, %s33
      %s22 = sphi 0, %s29
      %s23 = sphi 0, %s21
      %s24 = sphi 0, %s22
      %s25 = sphi 0, %s23
      %s26 = sphi 0, %s24
      %s36 = sphi 0, %s38
      %s39 = sphi 0, %s36
      %s40 = sphi 0, %s39
      %s56 = sphi 0, %s40
      %s62 = sphi 0, %s64
      %s65 = sphi 0, %s62
      %s66 = sphi 0, %s65
      %s82 = sphi 0, %s66
      %s88 = sphi 0, %s90
      %s91 = sphi 0, %s88
      %s92 = sphi 0, %s91
      %s108 = sphi 0, %s92
      %s114 = sphi 0, %s116
      %s117 = sphi 0, %s114
      %s118 = sphi 0, %s117
      %s134 = sphi 0, %s118
    $region4: #{tpu_custom_call.1} parent=1 // loop_header_branch
      %17 = sbr.rel (%p15) target = $region8
    $region5: #{tpu_custom_call.1} parent=1 // loop_body
      %s19 = ssub.s32 %s14, 1
      %s20 = ssub.s32 %s14, 2
      %s27 = sadd.s32 1, %s22
      %p28 = scmp.ge.s32.totalorder %s27, 2
      %s29 = scalar_select %p28, 0, %s27
      %s30 = sadd.s32 1, %s21
      %s31 = scalar_select %p28, %s30, %s21
      %p32 = scmp.ge.s32.totalorder %s31, 1
      %s33 = scalar_select %p32, 0, %s31
      %s34 = ssub.s32 %s21, %s33
      %p35 = scmp.eq.s32.totalorder %s34, 0
      %s37 = sadd.s32 %s36, 1
      %s38 = scalar_select %p35, %s36, %s37
      %p41 = pneg %p35
      %p42 = scmp.eq.s32.totalorder %s14, 1
      %p43 = por %p41, %p42
      %p44 = scmp.ne.s32.totalorder %s36, %s39
      %p45 = scmp.eq.s32.totalorder %s14, 0
      %p46 = por %p44, %p45
      %p47 = scmp.ne.s32.totalorder %s36, %s39
      %p48 = scmp.eq.s32.totalorder %s19, 1
      %p49 = por %p47, %p48
      %p50 = scmp.ne.s32.totalorder %s39, %s40
      %p51 = scmp.eq.s32.totalorder %s19, 0
      %p52 = por %p50, %p51
      %p53 = scmp.ne.s32.totalorder %s39, %s40
      %p54 = scmp.eq.s32.totalorder %s20, 1
      %p55 = por %p53, %p54
      %p57 = scmp.ne.s32.totalorder %s40, %s56
      %p58 = scmp.eq.s32.totalorder %s20, 0
      %p59 = por %p57, %p58
      %s60 = ssub.s32 %s22, %s29
      %p61 = scmp.eq.s32.totalorder %s60, 0
      %s63 = sadd.s32 %s62, 1
      %s64 = scalar_select %p61, %s62, %s63
      %p67 = pneg %p61
      %p68 = scmp.eq.s32.totalorder %s14, 1
      %p69 = por %p67, %p68
      %p70 = scmp.ne.s32.totalorder %s62, %s65
      %p71 = scmp.eq.s32.totalorder %s14, 0
      %p72 = por %p70, %p71
      %p73 = scmp.ne.s32.totalorder %s62, %s65
      %p74 = scmp.eq.s32.totalorder %s19, 1
      %p75 = por %p73, %p74
      %p76 = scmp.ne.s32.totalorder %s65, %s66
      %p77 = scmp.eq.s32.totalorder %s19, 0
      %p78 = por %p76, %p77
      %p79 = scmp.ne.s32.totalorder %s65, %s66
      %p80 = scmp.eq.s32.totalorder %s20, 1
      %p81 = por %p79, %p80
      %p83 = scmp.ne.s32.totalorder %s66, %s82
      %p84 = scmp.eq.s32.totalorder %s20, 0
      %p85 = por %p83, %p84
      %s86 = ssub.s32 %s22, %s29
      %p87 = scmp.eq.s32.totalorder %s86, 0
      %s89 = sadd.s32 %s88, 1
      %s90 = scalar_select %p87, %s88, %s89
      %p93 = pneg %p87
      %p94 = scmp.eq.s32.totalorder %s14, 1
      %p95 = por %p93, %p94
      %p96 = scmp.ne.s32.totalorder %s88, %s91
      %p97 = scmp.eq.s32.totalorder %s14, 0
      %p98 = por %p96, %p97
      %p99 = scmp.ne.s32.totalorder %s88, %s91
      %p100 = scmp.eq.s32.totalorder %s19, 1
      %p101 = por %p99, %p100
      %p102 = scmp.ne.s32.totalorder %s91, %s92
      %p103 = scmp.eq.s32.totalorder %s19, 0
      %p104 = por %p102, %p103
      %p105 = scmp.ne.s32.totalorder %s91, %s92
      %p106 = scmp.eq.s32.totalorder %s20, 1
      %p107 = por %p105, %p106
      %p109 = scmp.ne.s32.totalorder %s92, %s108
      %p110 = scmp.eq.s32.totalorder %s20, 0
      %p111 = por %p109, %p110
      %s112 = ssub.s32 %s21, %s33
      %p113 = scmp.eq.s32.totalorder %s112, 0
      %s115 = sadd.s32 %s114, 1
      %s116 = scalar_select %p113, %s114, %s115
      %p119 = pneg %p113
      %p120 = scmp.eq.s32.totalorder %s14, 1
      %p121 = por %p119, %p120
      %p122 = scmp.ne.s32.totalorder %s114, %s117
      %p123 = scmp.eq.s32.totalorder %s14, 0
      %p124 = por %p122, %p123
      %p125 = scmp.ne.s32.totalorder %s114, %s117
      %p126 = scmp.eq.s32.totalorder %s19, 1
      %p127 = por %p125, %p126
      %p128 = scmp.ne.s32.totalorder %s117, %s118
      %p129 = scmp.eq.s32.totalorder %s19, 0
      %p130 = por %p128, %p129
      %p131 = scmp.ne.s32.totalorder %s117, %s118
      %p132 = scmp.eq.s32.totalorder %s20, 1
      %p133 = por %p131, %p132
      %p135 = scmp.ne.s32.totalorder %s118, %s134
      %p136 = scmp.eq.s32.totalorder %s20, 0
      %p137 = por %p135, %p136
      %p138 = scmp.le.s32.totalorder 1, %s14
      %p139 = scmp.lt.s32.totalorder %s14, 3
      %p140 = pnand %p138, %p139
      %p141 = pneg %p140
      // Predicated region
      $region9: #{tpu_custom_call.1} parent=5 // pred_check
        _
      $region10: #{tpu_custom_call.1} parent=5 // pred_check_branch
        %143 = sbr.rel (%p140) target = $region12
      $region11: #{tpu_custom_call.1} parent=5 // pred_region
        %s144 = ssub.s32 %s14, 1
        // Predicated region
        $region13: #{tpu_custom_call.1} parent=11 // pred_check
          %p145 = pneg %p52
        $region14: #{tpu_custom_call.1} parent=11 // pred_check_branch
          %147 = sbr.rel (%p145) target = $region16
        $region15: #{tpu_custom_call.1} parent=11 // pred_region
          %s148 = smul.u32 2, %s23
          %s150 = ssub.s32 256, 256
          %151 = vsyncadd [#allocation5], %s150
          %s152 = smul.addr %s148, 128
          %s153 = scalar_lea.hbm %s0, %s152
          %s154 = sshll.u32 [#allocation4], 4
          %s155 = int_to_ptr.vmem [resolvable:$true] %s154
          %160 = dma.hbm_to_vmem [thread:$0]  %s153, 256, %s155, [#allocation5], 128, 128, 8
        $region16: #{tpu_custom_call.1} parent=11 // pred_fallthru
          _
      $region12: #{tpu_custom_call.1} parent=5 // pred_fallthru
        _
      %p161 = scmp.lt.s32.totalorder %s14, 2
      // Predicated region
      $region17: #{tpu_custom_call.1} parent=5 // pred_check
        %p162 = pneg %p161
      $region18: #{tpu_custom_call.1} parent=5 // pred_check_branch
        %164 = sbr.rel (%p162) target = $region20
      $region19: #{tpu_custom_call.1} parent=5 // pred_region
        // Predicated region
        $region21: #{tpu_custom_call.1} parent=19 // pred_check
          %p165 = pneg %p72
        $region22: #{tpu_custom_call.1} parent=19 // pred_check_branch
          %167 = sbr.rel (%p165) target = $region24
        $region23: #{tpu_custom_call.1} parent=19 // pred_region
          %s168 = sand.u32 %s14, 1
          %s169 = scalar_lea.sflag [#allocation8], %s168
          %s170 = sand.u32 %s62, 1
          %s171 = smul.addr %s170, 64
          %s172 = scalar_lea.vmem [#allocation7], %s171
          %s174 = ssub.s32 1024, 1024
          %175 = vsyncadd %s169, %s174
          %s176 = smul.addr %s22, 64
          %s177 = scalar_lea.hbm %s1, %s176
          %s178 = sshll.u32 %s172, 4
          %s179 = int_to_ptr.vmem [resolvable:$true] %s178
          %184 = dma.hbm_to_vmem [thread:$0]  %s177, 1024, %s179, %s169, 128, 64, 4
        $region24: #{tpu_custom_call.1} parent=19 // pred_fallthru
          _
        // Predicated region
        $region25: #{tpu_custom_call.1} parent=19 // pred_check
          %p185 = pneg %p98
        $region26: #{tpu_custom_call.1} parent=19 // pred_check_branch
          %187 = sbr.rel (%p185) target = $region28
        $region27: #{tpu_custom_call.1} parent=19 // pred_region
          %s188 = sand.u32 %s14, 1
          %s189 = scalar_lea.sflag [#allocation8], %s188
          %s190 = sand.u32 %s88, 1
          %s191 = smul.addr %s190, 64
          %s192 = scalar_lea.vmem [#allocation9], %s191
          %s193 = smul.u32 16, %s22
          %s195 = ssub.s32 1024, 1024
          %196 = vsyncadd %s189, %s195
          %s197 = smul.addr %s193, 64
          %s198 = scalar_lea.hbm %s2, %s197
          %s199 = sshll.u32 %s192, 4
          %s200 = int_to_ptr.vmem [resolvable:$true] %s199
          %205 = dma.hbm_to_vmem [thread:$0]  %s198, 1024, %s200, %s189, 64, 64, 4
        $region28: #{tpu_custom_call.1} parent=19 // pred_fallthru
          _
      $region20: #{tpu_custom_call.1} parent=5 // pred_fallthru
        _
      %p206 = scmp.le.s32.totalorder 1, %s14
      %p207 = scmp.lt.s32.totalorder %s14, 3
      %p208 = pnand %p206, %p207
      %p209 = pneg %p208
      // Predicated region
      $region29: #{tpu_custom_call.1} parent=5 // pred_check
        _
      $region30: #{tpu_custom_call.1} parent=5 // pred_check_branch
        %211 = sbr.rel (%p208) target = $region32
      $region31: #{tpu_custom_call.1} parent=5 // pred_region
        %s212 = ssub.s32 %s14, 1
        // Predicated region
        $region33: #{tpu_custom_call.1} parent=31 // pred_check
          %p213 = pneg %p52
        $region34: #{tpu_custom_call.1} parent=31 // pred_check_branch
          %215 = sbr.rel (%p213) target = $region36
        $region35: #{tpu_custom_call.1} parent=31 // pred_region
          %216 = dma.done [#allocation5], 256
        $region36: #{tpu_custom_call.1} parent=31 // pred_fallthru
          _
        %s217 = sand.u32 %s19, 1
        %s218 = scalar_lea.sflag [#allocation8], %s217
        %s219 = sand.u32 %s65, 1
        %s220 = smul.addr %s219, 64
        %s221 = scalar_lea.vmem [#allocation7], %s220
        // Predicated region
        $region37: #{tpu_custom_call.1} parent=31 // pred_check
          %p222 = pneg %p78
        $region38: #{tpu_custom_call.1} parent=31 // pred_check_branch
          %224 = sbr.rel (%p222) target = $region40
        $region39: #{tpu_custom_call.1} parent=31 // pred_region
          %225 = dma.done %s218, 1024
        $region40: #{tpu_custom_call.1} parent=31 // pred_fallthru
          _
        %s226 = sand.u32 %s19, 1
        %s227 = scalar_lea.sflag [#allocation8], %s226
        %s228 = sand.u32 %s91, 1
        %s229 = smul.addr %s228, 64
        %s230 = scalar_lea.vmem [#allocation9], %s229
        // Predicated region
        $region41: #{tpu_custom_call.1} parent=31 // pred_check
          %p231 = pneg %p104
        $region42: #{tpu_custom_call.1} parent=31 // pred_check_branch
          %233 = sbr.rel (%p231) target = $region44
        $region43: #{tpu_custom_call.1} parent=31 // pred_region
          %234 = dma.done %s227, 1024
        $region44: #{tpu_custom_call.1} parent=31 // pred_fallthru
          _
        %p235 = pneg %p52
        %p236 = pneg %p49
        %s237 = sand.u32 %s19, 1
        %s238 = scalar_lea.sflag [#allocation8], %s237
        %s239 = sand.u32 %s65, 1
        %s240 = smul.addr %s239, 64
        %s241 = scalar_lea.vmem [#allocation7], %s240
        %p242 = pneg %p78
        %p243 = pneg %p75
        %s244 = sand.u32 %s19, 1
        %s245 = scalar_lea.sflag [#allocation8], %s244
        %s246 = sand.u32 %s91, 1
        %s247 = smul.addr %s246, 64
        %s248 = scalar_lea.vmem [#allocation9], %s247
        %p249 = pneg %p104
        %p250 = pneg %p101
        %p251 = pneg %p130
        %p252 = pneg %p127
        %s253 = smul.u32 2, %s23
        %s254 = smul.u32 16, %s24
        %s255 = smul.u32 2, %s23
        %p257 = scmp.eq.s32.totalorder %s24, 0
        // Predicated region
        $region45: #{tpu_custom_call.1} parent=31 // pred_check
          %p258 = pneg %p257
        $region46: #{tpu_custom_call.1} parent=31 // pred_check_branch
          %260 = sbr.rel (%p258) target = $region48
        $region47: #{tpu_custom_call.1} parent=31 // pred_region
          %v261 = vld [vmem:[#allocation4] sm:$0xff]
          %v262 = vld [vmem:[#allocation4 + $0x8] sm:$0xff]
          %v263 = vmul.f32 %v261, %v261
          %v264 = vmul.f32 %v262, %v262
          %265 = vadd.xlane.f32.xlu0 %v263
          %v266 = vpop.xlane.xlu0 %265
          %267 = vadd.xlane.f32.xlu0 %v264
          %v268 = vpop.xlane.xlu0 %267
          %v269 = vrcp.pop 128.0
          %v270 = vmul.f32 %v266, %v269
          %v271 = vmul.f32 %v268, %v269
          %v272 = vadd.f32 %v270, 1e-06
          %v273 = vadd.f32 %v271, 1e-06
          %v274 = vrsqrt.pop %v272
          %v275 = vrsqrt.pop %v273
          %v276 = vmul.f32 %v261, %v274
          %v277 = vmul.f32 %v262, %v275
          %v278 = vpack.c.bf16 %v277, %v276
          %279 = vst [vmem:[#allocation2] sm:$0xff] %v278
          %280 = vst [vmem:[#allocation3] sm:$0xff] 0.0
          %281 = vst [vmem:[#allocation3 + $0x8] sm:$0xff] 0.0
        $region48: #{tpu_custom_call.1} parent=31 // pred_fallthru
          _
        %v282 = vld [vmem:[#allocation2] sm:$0xff]
        %v283 = vld [vmem:[%s221] sm:$0xf]
        %v284 = vld [vmem:[%s221 + $0x4] sm:$0xf]
        %v285 = vld [vmem:[%s221 + $0x8] sm:$0xf]
        %v286 = vld [vmem:[%s221 + $0xc] sm:$0xf]
        %v287 = vld [vmem:[%s221 + $0x10] sm:$0xf]
        %v288 = vld [vmem:[%s221 + $0x14] sm:$0xf]
        %v289 = vld [vmem:[%s221 + $0x18] sm:$0xf]
        %v290 = vld [vmem:[%s221 + $0x1c] sm:$0xf]
        %v291 = vld [vmem:[%s221 + $0x20] sm:$0xf]
        %v292 = vld [vmem:[%s221 + $0x24] sm:$0xf]
        %v293 = vld [vmem:[%s221 + $0x28] sm:$0xf]
        %v294 = vld [vmem:[%s221 + $0x2c] sm:$0xf]
        %v295 = vld [vmem:[%s221 + $0x30] sm:$0xf]
        %v296 = vld [vmem:[%s221 + $0x34] sm:$0xf]
        %v297 = vld [vmem:[%s221 + $0x38] sm:$0xf]
        %v298 = vld [vmem:[%s221 + $0x3c] sm:$0xf]
        %v315 = vunpack.c.l.b16 %v283
        %v316 = vunpack.c.l.b16 %v284
        %v317 = vunpack.c.l.b16 %v285
        %v318 = vunpack.c.l.b16 %v286
        %v319 = vunpack.c.l.b16 %v287
        %v320 = vunpack.c.l.b16 %v288
        %v321 = vunpack.c.l.b16 %v289
        %v322 = vunpack.c.l.b16 %v290
        %v323 = vunpack.c.l.b16 %v291
        %v324 = vunpack.c.l.b16 %v292
        %v325 = vunpack.c.l.b16 %v293
        %v326 = vunpack.c.l.b16 %v294
        %v327 = vunpack.c.l.b16 %v295
        %v328 = vunpack.c.l.b16 %v296
        %v329 = vunpack.c.l.b16 %v297
        %v330 = vunpack.c.l.b16 %v298
        %v331 = vpack.c.b16 %v316, %v315
        %v332 = vpack.c.b16 %v318, %v317
        %v333 = vpack.c.b16 %v320, %v319
        %v334 = vpack.c.b16 %v322, %v321
        %v335 = vpack.c.b16 %v324, %v323
        %v336 = vpack.c.b16 %v326, %v325
        %v337 = vpack.c.b16 %v328, %v327
        %v338 = vpack.c.b16 %v330, %v329
        %347 = vmatprep.subr.bf16.mxu0 0
        %348 = vmatpush1.bf16.msra.mxu0 %v331
        %349 = vmatprep.subr.bf16.mxu0 0
        %350 = vmatpush1.bf16.msra.mxu0 %v332
        %351 = vmatprep.subr.bf16.mxu0 0
        %352 = vmatpush1.bf16.msra.mxu0 %v333
        %353 = vmatprep.subr.bf16.mxu0 0
        %354 = vmatpush1.bf16.msra.mxu0 %v334
        %355 = vmatprep.subr.bf16.mxu0 0
        %356 = vmatpush1.bf16.msra.mxu0 %v335
        %357 = vmatprep.subr.bf16.mxu0 0
        %358 = vmatpush1.bf16.msra.mxu0 %v336
        %359 = vmatprep.subr.bf16.mxu0 0
        %360 = vmatpush1.bf16.msra.mxu0 %v337
        %361 = vmatprep.subr.bf16.mxu0 0
        %362 = vmatpush1.bf16.msra.mxu0 %v338
        %363 = vmatprep.subr.bf16.mxu0 0
        %364 = vmatpush1.bf16.msra.mxu0 0
        %365 = vmatprep.subr.bf16.mxu0 0
        %366 = vmatpush1.bf16.msra.mxu0 0
        %367 = vmatprep.subr.bf16.mxu0 0
        %368 = vmatpush1.bf16.msra.mxu0 0
        %369 = vmatprep.subr.bf16.mxu0 0
        %370 = vmatpush1.bf16.msra.mxu0 0
        %371 = vmatprep.subr.bf16.mxu0 0
        %372 = vmatpush1.bf16.msra.mxu0 0
        %373 = vmatprep.subr.bf16.mxu0 0
        %374 = vmatpush1.bf16.msra.mxu0 0
        %375 = vmatprep.subr.bf16.mxu0 0
        %376 = vmatpush1.bf16.msra.mxu0 0
        %377 = vmatprep.subr.bf16.mxu0 0
        %378 = vmatpush1.bf16.msra.mxu0 0
        %379 = vmatprep.mubr.bf16.mxu0 0
        %380 = vmatmul.mubr.bf16.gmra.mrb[0].mxu0 %v282
        %v381 = vpop.f32.mrb[0].mxu0
        %v382 = vadd.f32 0.0, %v381
        %v383 = vpop.f32.mrb[0].mxu0
        %v384 = vpop.f32.mrb[0].mxu0
        %v385 = vadd.f32 0.0, %v384
        %v386 = vpop.f32.mrb[0].mxu0
        %387 = vdwg.mxu0
        %v388 = vmax.f32 %v382, 0.0
        %v389 = vmax.f32 %v385, 0.0
        %v390 = vpack.c.bf16 %v389, %v388
        %v391 = vld [vmem:[#allocation3] sm:$0xff]
        %v392 = vld [vmem:[#allocation3 + $0x8] sm:$0xff]
        %v393 = vld [vmem:[%s230] sm:$0xf]
        %v394 = vld [vmem:[%s230 + $0x4] sm:$0xf]
        %v395 = vld [vmem:[%s230 + $0x8] sm:$0xf]
        %v396 = vld [vmem:[%s230 + $0xc] sm:$0xf]
        %v397 = vld [vmem:[%s230 + $0x10] sm:$0xf]
        %v398 = vld [vmem:[%s230 + $0x14] sm:$0xf]
        %v399 = vld [vmem:[%s230 + $0x18] sm:$0xf]
        %v400 = vld [vmem:[%s230 + $0x1c] sm:$0xf]
        %v401 = vld [vmem:[%s230 + $0x20] sm:$0xf]
        %v402 = vld [vmem:[%s230 + $0x24] sm:$0xf]
        %v403 = vld [vmem:[%s230 + $0x28] sm:$0xf]
        %v404 = vld [vmem:[%s230 + $0x2c] sm:$0xf]
        %v405 = vld [vmem:[%s230 + $0x30] sm:$0xf]
        %v406 = vld [vmem:[%s230 + $0x34] sm:$0xf]
        %v407 = vld [vmem:[%s230 + $0x38] sm:$0xf]
        %v408 = vld [vmem:[%s230 + $0x3c] sm:$0xf]
        %v425 = vunpack.c.l.b16 %v393
        %v426 = vunpack.c.l.b16 %v394
        %v427 = vunpack.c.l.b16 %v395
        %v428 = vunpack.c.l.b16 %v396
        %v429 = vunpack.c.l.b16 %v397
        %v430 = vunpack.c.l.b16 %v398
        %v431 = vunpack.c.l.b16 %v399
        %v432 = vunpack.c.l.b16 %v400
        %v433 = vunpack.c.l.b16 %v401
        %v434 = vunpack.c.l.b16 %v402
        %v435 = vunpack.c.l.b16 %v403
        %v436 = vunpack.c.l.b16 %v404
        %v437 = vunpack.c.l.b16 %v405
        %v438 = vunpack.c.l.b16 %v406
        %v439 = vunpack.c.l.b16 %v407
        %v440 = vunpack.c.l.b16 %v408
        %v441 = vpack.c.b16 %v426, %v425
        %v442 = vpack.c.b16 %v428, %v427
        %v443 = vpack.c.b16 %v430, %v429
        %v444 = vpack.c.b16 %v432, %v431
        %v445 = vpack.c.b16 %v434, %v433
        %v446 = vpack.c.b16 %v436, %v435
        %v447 = vpack.c.b16 %v438, %v437
        %v448 = vpack.c.b16 %v440, %v439
        %457 = vmatprep.subr.bf16.mxu0 0
        %458 = vmatpush1.bf16.msra.mxu0 %v441
        %459 = vmatprep.subr.bf16.mxu0 0
        %460 = vmatpush1.bf16.msra.mxu0 %v442
        %461 = vmatprep.subr.bf16.mxu0 0
        %462 = vmatpush1.bf16.msra.mxu0 %v443
        %463 = vmatprep.subr.bf16.mxu0 0
        %464 = vmatpush1.bf16.msra.mxu0 %v444
        %465 = vmatprep.subr.bf16.mxu0 0
        %466 = vmatpush1.bf16.msra.mxu0 %v445
        %467 = vmatprep.subr.bf16.mxu0 0
        %468 = vmatpush1.bf16.msra.mxu0 %v446
        %469 = vmatprep.subr.bf16.mxu0 0
        %470 = vmatpush1.bf16.msra.mxu0 %v447
        %471 = vmatprep.subr.bf16.mxu0 0
        %472 = vmatpush1.bf16.msra.mxu0 %v448
        %473 = vmatprep.subr.bf16.mxu0 0
        %474 = vmatpush1.bf16.msra.mxu0 0
        %475 = vmatprep.subr.bf16.mxu0 0
        %476 = vmatpush1.bf16.msra.mxu0 0
        %477 = vmatprep.subr.bf16.mxu0 0
        %478 = vmatpush1.bf16.msra.mxu0 0
        %479 = vmatprep.subr.bf16.mxu0 0
        %480 = vmatpush1.bf16.msra.mxu0 0
        %481 = vmatprep.subr.bf16.mxu0 0
        %482 = vmatpush1.bf16.msra.mxu0 0
        %483 = vmatprep.subr.bf16.mxu0 0
        %484 = vmatpush1.bf16.msra.mxu0 0
        %485 = vmatprep.subr.bf16.mxu0 0
        %486 = vmatpush1.bf16.msra.mxu0 0
        %487 = vmatprep.subr.bf16.mxu0 0
        %488 = vmatpush1.bf16.msra.mxu0 0
        %489 = vmatprep.mubr.bf16.mxu0 0
        %490 = vmatmul.mubr.bf16.gmra.mrb[0].mxu0 %v390
        %v491 = vpop.f32.mrb[0].mxu0
        %v492 = vadd.f32 0.0, %v491
        %v493 = vpop.f32.mrb[0].mxu0
        %v494 = vpop.f32.mrb[0].mxu0
        %v495 = vadd.f32 0.0, %v494
        %v496 = vpop.f32.mrb[0].mxu0
        %497 = vdwg.mxu0
        %v498 = vadd.f32 %v391, %v492
        %v499 = vadd.f32 %v392, %v495
        %500 = vst [vmem:[#allocation3] sm:$0xff] %v498
        %501 = vst [vmem:[#allocation3 + $0x8] sm:$0xff] %v499
        %p502 = scmp.eq.s32.totalorder %s24, 1
        // Predicated region
        $region49: #{tpu_custom_call.1} parent=31 // pred_check
          %p503 = pneg %p502
        $region50: #{tpu_custom_call.1} parent=31 // pred_check_branch
          %505 = sbr.rel (%p503) target = $region52
        $region51: #{tpu_custom_call.1} parent=31 // pred_region
          %v506 = vld [vmem:[#allocation4] sm:$0xff]
          %v507 = vld [vmem:[#allocation4 + $0x8] sm:$0xff]
          %v508 = vld [vmem:[#allocation3] sm:$0xff]
          %v509 = vld [vmem:[#allocation3 + $0x8] sm:$0xff]
          %v510 = vadd.f32 %v506, %v508
          %v511 = vadd.f32 %v507, %v509
          %512 = vst [vmem:[#allocation10] sm:$0xff] %v510
          %513 = vst [vmem:[#allocation10 + $0x8] sm:$0xff] %v511
        $region52: #{tpu_custom_call.1} parent=31 // pred_fallthru
          _
        // Predicated region
        $region53: #{tpu_custom_call.1} parent=31 // pred_check
          %p514 = pneg %p127
        $region54: #{tpu_custom_call.1} parent=31 // pred_check_branch
          %516 = sbr.rel (%p514) target = $region56
        $region55: #{tpu_custom_call.1} parent=31 // pred_region
          %s517 = smul.u32 2, %s23
          %s519 = ssub.s32 256, 256
          %520 = vsyncadd [#allocation6], %s519
          %s521 = smul.addr %s517, 128
          %s522 = scalar_lea.hbm %s3, %s521
          %s523 = sshll.u32 [#allocation10], 4
          %s524 = int_to_ptr.vmem [resolvable:$true] %s523
          %529 = dma.vmem_to_hbm [thread:$0]  %s524, 256, %s522, [#allocation6], 128, 128, 8
        $region56: #{tpu_custom_call.1} parent=31 // pred_fallthru
          _
        // Predicated region
        $region57: #{tpu_custom_call.1} parent=31 // pred_check
          %p530 = pneg %p127
        $region58: #{tpu_custom_call.1} parent=31 // pred_check_branch
          %532 = sbr.rel (%p530) target = $region60
        $region59: #{tpu_custom_call.1} parent=31 // pred_region
          %533 = dma.done [#allocation6], 256
        $region60: #{tpu_custom_call.1} parent=31 // pred_fallthru
          _
      $region32: #{tpu_custom_call.1} parent=5 // pred_fallthru
        _
      %p534 = scmp.le.s32.totalorder 2, %s14
      // Predicated region
      $region61: #{tpu_custom_call.1} parent=5 // pred_check
        %p535 = pneg %p534
      $region62: #{tpu_custom_call.1} parent=5 // pred_check_branch
        %537 = sbr.rel (%p535) target = $region64
      $region63: #{tpu_custom_call.1} parent=5 // pred_region
        %s538 = ssub.s32 %s14, 2
      $region64: #{tpu_custom_call.1} parent=5 // pred_fallthru
        _
    $region6: #{tpu_custom_call.1} parent=1 // loop_footer
      %s18 = sadd.s32 1, %s14
    $region7: #{tpu_custom_call.1} parent=1 // loop_footer_branch
      %13 = sbr.rel target = $region3
    $region8: #{tpu_custom_call.1} parent=1 // loop_exit
      _
    %539 = vsyncpa [#allocation5], 1
    %s540 = scalar_lea.sflag [#allocation5], 1
    %541 = vsyncpa %s540, 1
    %542 = vsyncpa [#allocation8], 1
    %s543 = scalar_lea.sflag [#allocation8], 1
    %544 = vsyncpa %s543, 1
    %545 = vsyncpa [#allocation6], 1
    %s546 = scalar_lea.sflag [#allocation6], 1
    %547 = vsyncpa %s546, 1

</llo_original>
